<compile_context>
chip_gen: v6e
topology: v6e:2x2x1
jax: 0.10.0
libtpu: 0.0.40
codegen_flags: <defaults>
</compile_context>

<pallas_src>
import functools

import jax
import jax.numpy as jnp
from jax import lax
from jax.experimental import pallas as pl
from jax.experimental.pallas import tpu as pltpu

BN_EPS = 1e-5


def _round_up(n, m):
    return ((n + m - 1) // m) * m


def _vmem_capacity_bytes():
    try:
        return int(pltpu.get_tpu_info().vmem_capacity_bytes)
    except Exception:
        return 64 * 2 ** 20  # conservative (v7x per-TC size)


def _vmem_limit(est_bytes):
    cap = _vmem_capacity_bytes()
    return int(min(int(0.85 * cap), max(32 * 2 ** 20, 2 * est_bytes)))


# --------------------------------------------------------------------------
# Fast path: whole batch fits in one tile -> single grid step, no phase axis.
# --------------------------------------------------------------------------
def _mlp_single_kernel(x_ref, w1_ref, g1_ref, be1_ref, w2_ref, g2_ref, be2_ref,
                       w3_ref, b3_ref, o_ref, *, inv_b):
    def bn_relu(h, gamma, beta):
        mean = jnp.sum(h, axis=0, keepdims=True) * inv_b
        var = jnp.maximum(jnp.sum(h * h, axis=0, keepdims=True) * inv_b
                          - mean * mean, 0.0)
        scale = gamma * lax.rsqrt(var + BN_EPS)
        return jnp.maximum(h * scale + (beta - mean * scale), 0.0)

    h1 = jnp.dot(x_ref[...].astype(jnp.bfloat16), w1_ref[...],
                 preferred_element_type=jnp.float32)
    a1 = bn_relu(h1, g1_ref[...], be1_ref[...])
    h2 = jnp.dot(a1.astype(jnp.bfloat16), w2_ref[...],
                 preferred_element_type=jnp.float32)
    a2 = bn_relu(h2, g2_ref[...], be2_ref[...])
    o_ref[...] = (jnp.dot(a2.astype(jnp.bfloat16), w3_ref[...],
                          preferred_element_type=jnp.float32)
                  + b3_ref[...]).astype(o_ref.dtype)


# --------------------------------------------------------------------------
# Tiled path: 3-phase grid (phase outer, batch-tile inner) so BatchNorm stats
# are computed over the FULL batch before normalization.
# --------------------------------------------------------------------------
def _mlp_phased_kernel(x_ref,
                       w1_ref, g1_ref, be1_ref,
                       w2_ref, g2_ref, be2_ref,
                       w3_ref, b3_ref,
                       o_ref,
                       h1_all, h2_all, red1, red2, aff1, aff2,
                       *, inv_b, b_real, need_mask):
    p = pl.program_id(0)          # phase: 0=layer1, 1=layer2, 2=layer_out
    j = pl.program_id(1)          # batch tile
    tb = o_ref.shape[0]
    row0 = pl.multiple_of(j * tb, tb)

    # ---- phase 0: h1 = x @ w1; store bf16; accumulate full-batch sum/sumsq ----
    @pl.when(p == 0)
    def _():
        @pl.when(j == 0)
        def _():
            red1[...] = jnp.zeros_like(red1)
            red2[...] = jnp.zeros_like(red2)

        h1 = jnp.dot(x_ref[...].astype(jnp.bfloat16), w1_ref[...],
                     preferred_element_type=jnp.float32)
        h1_all[pl.ds(row0, tb), :] = h1.astype(h1_all.dtype)
        # Padded x rows are zero -> h1 rows are exactly zero -> no mask needed.
        red1[...] += jnp.concatenate(
            [jnp.sum(h1, axis=0, keepdims=True),
             jnp.sum(h1 * h1, axis=0, keepdims=True)], axis=0)

    # ---- phase 1: BN1 + ReLU, h2 = a1 @ w2, accumulate (masked) layer-2 stats --
    @pl.when(p == 1)
    def _():
        @pl.when(j == 0)
        def _():
            s = red1[...]
            mean = s[0:1, :] * inv_b
            var = jnp.maximum(s[1:2, :] * inv_b - mean * mean, 0.0)
            scale = g1_ref[...] * lax.rsqrt(var + BN_EPS)
            aff1[...] = jnp.concatenate([scale, be1_ref[...] - mean * scale],
                                        axis=0)

        aff = aff1[...]
        h1 = h1_all[pl.ds(row0, tb), :].astype(jnp.float32)
        a1 = jnp.maximum(h1 * aff[0:1, :] + aff[1:2, :], 0.0)
        h2 = jnp.dot(a1.astype(jnp.bfloat16), w2_ref[...],
                     preferred_element_type=jnp.float32)
        h2_all[pl.ds(row0, tb), :] = h2.astype(h2_all.dtype)
        if need_mask:
            # Padded rows have a1 = ReLU(shift) != 0 -> exclude from stats.
            valid = (row0 + lax.broadcasted_iota(jnp.int32, (tb, 1), 0)) < b_real
            h2s = jnp.where(valid, h2, 0.0)
        else:
            h2s = h2
        red2[...] += jnp.concatenate(
            [jnp.sum(h2s, axis=0, keepdims=True),
             jnp.sum(h2s * h2s, axis=0, keepdims=True)], axis=0)

    # ---- phase 2: BN2 + ReLU, out = a2 @ w3 + b3 -------------------------------
    @pl.when(p == 2)
    def _():
        @pl.when(j == 0)
        def _():
            s = red2[...]
            mean = s[0:1, :] * inv_b
            var = jnp.maximum(s[1:2, :] * inv_b - mean * mean, 0.0)
            scale = g2_ref[...] * lax.rsqrt(var + BN_EPS)
            aff2[...] = jnp.concatenate([scale, be2_ref[...] - mean * scale],
                                        axis=0)

        aff = aff2[...]
        h2 = h2_all[pl.ds(row0, tb), :].astype(jnp.float32)
        a2 = jnp.maximum(h2 * aff[0:1, :] + aff[1:2, :], 0.0)
        o_ref[...] = (jnp.dot(a2.astype(jnp.bfloat16), w3_ref[...],
                              preferred_element_type=jnp.float32)
                      + b3_ref[...]).astype(o_ref.dtype)


def multiclass_classification_forward(x, params):
    (w1, b1, g1, be1, w2, b2, g2, be2, w3, b3) = params
    del b1, b2  # exactly cancelled by training-mode BatchNorm mean subtraction
    B, F = x.shape
    H1 = w1.shape[1]
    H2 = w2.shape[1]
    C = w3.shape[1]
    Cp = _round_up(C, 128)   # lane-dense output (class) dim

    # One-time weight prep: bf16 matmul operands, pad only the class dim.
    # x stays unpadded in F and f32; it is cast to bf16 inside the kernel.
    w1b = w1.astype(jnp.bfloat16)
    w2b = w2.astype(jnp.bfloat16)
    w3p = jnp.pad(w3, ((0, 0), (0, Cp - C))).astype(jnp.bfloat16)
    b3p = jnp.pad(b3, ((0, 0), (0, Cp - C))).astype(jnp.float32)

    vmem_cap = _vmem_capacity_bytes()
    TB = 512 if vmem_cap >= 96 * 2 ** 20 else 256   # v5e/v6e vs v7x batch tile

    # ---------------- fast path: whole batch in one grid step ----------------
    if B <= TB:
        est = (2 * (F * H1 + H1 * H2 + H2 * Cp)
               + 4 * B * (F + Cp + H1 + H2)
               + 4 * 8 * (H1 + H2 + Cp))
        kernel = functools.partial(_mlp_single_kernel, inv_b=1.0 / B)
        out = pl.pallas_call(
            kernel,
            out_shape=jax.ShapeDtypeStruct((B, Cp), jnp.float32),
            grid_spec=pltpu.PrefetchScalarGridSpec(
                num_scalar_prefetch=0,
                grid=(1,),
                in_specs=[
                    pl.BlockSpec((B, F), lambda i: (0, 0)),
                    pl.BlockSpec((F, H1), lambda i: (0, 0)),
                    pl.BlockSpec((1, H1), lambda i: (0, 0)),
                    pl.BlockSpec((1, H1), lambda i: (0, 0)),
                    pl.BlockSpec((H1, H2), lambda i: (0, 0)),
                    pl.BlockSpec((1, H2), lambda i: (0, 0)),
                    pl.BlockSpec((1, H2), lambda i: (0, 0)),
                    pl.BlockSpec((H2, Cp), lambda i: (0, 0)),
                    pl.BlockSpec((1, Cp), lambda i: (0, 0)),
                ],
                out_specs=pl.BlockSpec((B, Cp), lambda i: (0, 0)),
            ),
            compiler_params=pltpu.CompilerParams(
                dimension_semantics=("arbitrary",),
                vmem_limit_bytes=_vmem_limit(est),
            ),
        )(x, w1b, g1, be1, w2b, g2, be2, w3p, b3p)
        return out[:, :C]

    # ---------------- tiled 3-phase path ----------------
    Bp = _round_up(B, TB)
    NT = Bp // TB
    need_mask = Bp != B
    xp = x if not need_mask else jnp.pad(x, ((0, Bp - B), (0, 0)))  # zero rows

    # Phase-gated maps: x is only streamed in phase 0 (parked on the last block
    # afterwards -> no re-DMA); output blocks are only written back in phase 2.
    def x_map(p, j):
        return (jnp.where(p == 0, j, NT - 1), 0)

    def out_map(p, j):
        return (jnp.where(p == 2, j, 0), 0)

    est = (2 * (F * H1 + H1 * H2 + H2 * Cp)   # bf16 weights
           + 2 * Bp * (H1 + H2)               # bf16 persistent activations
           + 2 * 4 * TB * F                   # x tile (f32, double-buffered)
           + 2 * 4 * TB * Cp                  # out tile (f32, double-buffered)
           + 4 * 8 * (H1 + H2))               # stats / affine scratch
    vmem_limit = _vmem_limit(est)

    kernel = functools.partial(_mlp_phased_kernel, inv_b=1.0 / B,
                               b_real=B, need_mask=need_mask)

    def build(single_buffer_weights):
        if single_buffer_weights:
            def wspec(shape):
                return pl.BlockSpec(shape, lambda p, j: (0, 0),
                                    pipeline_mode=pl.Buffered(1))
        else:
            def wspec(shape):
                return pl.BlockSpec(shape, lambda p, j: (0, 0))

        in_specs = [
            pl.BlockSpec((TB, F), x_map),                  # x (streamed, phase 0)
            wspec((F, H1)), wspec((1, H1)), wspec((1, H1)),  # w1, gamma1, beta1
            wspec((H1, H2)), wspec((1, H2)), wspec((1, H2)),  # w2, gamma2, beta2
            wspec((H2, Cp)), wspec((1, Cp)),               # w3, b3
        ]
        out_spec = pl.BlockSpec((TB, Cp), out_map)
        scratch = [
            pltpu.VMEM((Bp, H1), jnp.bfloat16),   # h1_all (pre-BN activations)
            pltpu.VMEM((Bp, H2), jnp.bfloat16),   # h2_all
            pltpu.VMEM((2, H1), jnp.float32),     # red1: [sum; sumsq]
            pltpu.VMEM((2, H2), jnp.float32),     # red2
            pltpu.VMEM((2, H1), jnp.float32),     # aff1: [scale; shift]
            pltpu.VMEM((2, H2), jnp.float32),     # aff2
        ]
        return pl.pallas_call(
            kernel,
            out_shape=jax.ShapeDtypeStruct((Bp, Cp), jnp.float32),
            grid_spec=pltpu.PrefetchScalarGridSpec(
                num_scalar_prefetch=0,
                grid=(3, NT),                     # (phase, batch-tile)
                in_specs=in_specs,
                out_specs=out_spec,
                scratch_shapes=scratch,
            ),
            compiler_params=pltpu.CompilerParams(
                dimension_semantics=("arbitrary", "arbitrary"),
                vmem_limit_bytes=vmem_limit,
            ),
        )

    args = (xp, w1b, g1, be1, w2b, g2, be2, w3p, b3p)
    try:
        out = build(True)(*args)
    except Exception:
        # pipeline_mode=pl.Buffered(1) not supported by this JAX build ->
        # fall back to default double-buffered resident weights.
        out = build(False)(*args)
    return out[:B, :C]


# --------------------------------------------------------------------------
# Parameters & references
# --------------------------------------------------------------------------
def init_params(key, num_feature, num_class):
    """Deterministic synthetic parameter init (shapes match the PyTorch module)."""
    ks = jax.random.split(key, 6)
    w1 = jax.random.normal(ks[0], (num_feature, 512), jnp.float32) * 0.05
    b1 = jax.random.normal(ks[1], (1, 512), jnp.float32) * 0.05
    g1 = jnp.full((1, 512), 1.1, jnp.float32)
    be1 = jnp.full((1, 512), 0.05, jnp.float32)
    w2 = jax.random.normal(ks[2], (512, 256), jnp.float32) * 0.05
    b2 = jax.random.normal(ks[3], (1, 256), jnp.float32) * 0.05
    g2 = jnp.full((1, 256), 0.9, jnp.float32)
    be2 = jnp.full((1, 256), -0.05, jnp.float32)
    w3 = jax.random.normal(ks[4], (256, num_class), jnp.float32) * 0.05
    b3 = jax.random.normal(ks[5], (1, num_class), jnp.float32) * 0.05
    return (w1, b1, g1, be1, w2, b2, g2, be2, w3, b3)


def _bn_train_ref(h, gamma, beta):
    mean = jnp.mean(h, axis=0, keepdims=True)
    var = jnp.mean((h - mean) ** 2, axis=0, keepdims=True)
    return (h - mean) * lax.rsqrt(var + BN_EPS) * gamma + beta


def reference_forward_f32(x, params):
    """Faithful PyTorch-semantics forward (f32 matmuls, biases, two-pass variance)."""
    (w1, b1, g1, be1, w2, b2, g2, be2, w3, b3) = params
    h = x @ w1 + b1
    h = jnp.maximum(_bn_train_ref(h, g1, be1), 0.0)
    h = h @ w2 + b2
    h = jnp.maximum(_bn_train_ref(h, g2, be2), 0.0)
    return h @ w3 + b3


def reference_forward_matched(x, params, bf16_hidden):
    """Plain-JAX mirror of the kernel math (bf16 matmul inputs, fused one-pass BN,
    optional bf16 round-trip of the stored hidden activations)."""
    (w1, b1, g1, be1, w2, b2, g2, be2, w3, b3) = params
    B = x.shape[0]

    def bn_affine(h, gamma, beta):
        mean = jnp.sum(h, axis=0, keepdims=True) / B
        var = jnp.maximum(jnp.sum(h * h, axis=0, keepdims=True) / B - mean * mean, 0.0)
        scale = gamma * lax.rsqrt(var + BN_EPS)
        return scale, beta - mean * scale

    def maybe_round(h):
        return h.astype(jnp.bfloat16).astype(jnp.float32) if bf16_hidden else h

    h1 = jnp.dot(x.astype(jnp.bfloat16), w1.astype(jnp.bfloat16),
                 preferred_element_type=jnp.float32)
    s1, t1 = bn_affine(h1, g1, be1)
    a1 = jnp.maximum(maybe_round(h1) * s1 + t1, 0.0)
    h2 = jnp.dot(a1.astype(jnp.bfloat16), w2.astype(jnp.bfloat16),
                 preferred_element_type=jnp.float32)
    s2, t2 = bn_affine(h2, g2, be2)
    a2 = jnp.maximum(maybe_round(h2) * s2 + t2, 0.0)
    return jnp.dot(a2.astype(jnp.bfloat16), w3.astype(jnp.bfloat16),
                   preferred_element_type=jnp.float32) + b3


if __name__ == "__main__":
    num_feature, num_class = 32, 8
    key = jax.random.PRNGKey(0)
    kx1, kx2, kp = jax.random.split(key, 3)
    params = init_params(kp, num_feature, num_class)

    # --- small batch -> single-step fast path ---
    x_small = jax.random.normal(kx1, (8, num_feature), jnp.float32)
    out_small = jax.block_until_ready(
        multiclass_classification_forward(x_small, params))
    assert out_small.shape == (8, num_class)
    assert jnp.allclose(out_small,
                        reference_forward_matched(x_small, params, bf16_hidden=False),
                        atol=5e-3, rtol=5e-3), "small batch: mismatch vs matched ref"
    assert jnp.allclose(out_small, reference_forward_f32(x_small, params),
                        atol=1e-1, rtol=1e-1), "small batch: mismatch vs f32 ref"

    # --- larger, non-multiple-of-tile batch -> 3-phase tiled path (pad + mask) ---
    x_big = jax.random.normal(kx2, (600, num_feature), jnp.float32)
    out_big = jax.block_until_ready(
        multiclass_classification_forward(x_big, params))
    assert out_big.shape == (600, num_class)
    assert jnp.allclose(out_big,
                        reference_forward_matched(x_big, params, bf16_hidden=True),
                        atol=1e-2, rtol=1e-2), "big batch: mismatch vs matched ref"
    assert jnp.allclose(out_big, reference_forward_f32(x_big, params),
                        atol=1.5e-1, rtol=1.5e-1), "big batch: mismatch vs f32 ref"

    print("KERNEL_OK")
</pallas_src>

<mosaic_0001>
module attributes {stable_mosaic.version = 11 : i64} {
  func.func @_mlp_single_kernel(%arg0: i32, %arg1: memref<8x32xf32, #tpu.memory_space<vmem>>, %arg2: memref<32x512xbf16, #tpu.memory_space<vmem>>, %arg3: memref<1x512xf32, #tpu.memory_space<vmem>>, %arg4: memref<1x512xf32, #tpu.memory_space<vmem>>, %arg5: memref<512x256xbf16, #tpu.memory_space<vmem>>, %arg6: memref<1x256xf32, #tpu.memory_space<vmem>>, %arg7: memref<1x256xf32, #tpu.memory_space<vmem>>, %arg8: memref<256x128xbf16, #tpu.memory_space<vmem>>, %arg9: memref<1x128xf32, #tpu.memory_space<vmem>>, %arg10: memref<8x128xf32, #tpu.memory_space<vmem>>) attributes {dimension_semantics = [#tpu.dimension_semantics<arbitrary>], iteration_bounds = array<i64: 1>, scalar_prefetch = 0 : i64, scratch_operands = 0 : i64, tpu.core_type = #tpu.core_type<tc>, window_params = [{pipeline_mode = #tpu.pipeline_mode<synchronous>, transform_indices = @transform_0, window_bounds = array<i64: 8, 32>}, {pipeline_mode = #tpu.pipeline_mode<synchronous>, transform_indices = @transform_1, window_bounds = array<i64: 32, 512>}, {pipeline_mode = #tpu.pipeline_mode<synchronous>, transform_indices = @transform_2, window_bounds = array<i64: 1, 512>}, {pipeline_mode = #tpu.pipeline_mode<synchronous>, transform_indices = @transform_3, window_bounds = array<i64: 1, 512>}, {pipeline_mode = #tpu.pipeline_mode<synchronous>, transform_indices = @transform_4, window_bounds = array<i64: 512, 256>}, {pipeline_mode = #tpu.pipeline_mode<synchronous>, transform_indices = @transform_5, window_bounds = array<i64: 1, 256>}, {pipeline_mode = #tpu.pipeline_mode<synchronous>, transform_indices = @transform_6, window_bounds = array<i64: 1, 256>}, {pipeline_mode = #tpu.pipeline_mode<synchronous>, transform_indices = @transform_7, window_bounds = array<i64: 256, 128>}, {pipeline_mode = #tpu.pipeline_mode<synchronous>, transform_indices = @transform_8, window_bounds = array<i64: 1, 128>}, {pipeline_mode = #tpu.pipeline_mode<synchronous>, transform_indices = @transform_9, window_bounds = array<i64: 8, 128>}]} {
    %c0 = arith.constant 0 : index
    %c0_0 = arith.constant 0 : index
    %0 = vector.load %arg1[%c0, %c0_0] : memref<8x32xf32, #tpu.memory_space<vmem>>, vector<8x32xf32>
    %1 = arith.truncf %0 : vector<8x32xf32> to vector<8x32xbf16>
    %c0_1 = arith.constant 0 : index
    %c0_2 = arith.constant 0 : index
    %2 = vector.load %arg2[%c0_1, %c0_2] : memref<32x512xbf16, #tpu.memory_space<vmem>>, vector<32x512xbf16>
    %cst = arith.constant dense<0.000000e+00> : vector<8x512xf32>
    %3 = tpu.matmul %1, %2, %cst {dimension_numbers = #tpu.dot_dimension_numbers<[1], [0], [0], [1], [0, 0, 1, 1], [], []>} : vector<8x32xbf16>, vector<32x512xbf16>, vector<8x512xf32> -> vector<8x512xf32>
    %c0_3 = arith.constant 0 : index
    %c0_4 = arith.constant 0 : index
    %4 = vector.load %arg3[%c0_3, %c0_4] : memref<1x512xf32, #tpu.memory_space<vmem>>, vector<1x512xf32>
    %c0_5 = arith.constant 0 : index
    %c0_6 = arith.constant 0 : index
    %5 = vector.load %arg4[%c0_5, %c0_6] : memref<1x512xf32, #tpu.memory_space<vmem>>, vector<1x512xf32>
    %cst_7 = arith.constant dense<0.000000e+00> : vector<512xf32>
    %6 = vector.multi_reduction <add>, %3, %cst_7 [0] : vector<8x512xf32> to vector<512xf32>
    %7 = vector.shape_cast %6 : vector<512xf32> to vector<1x512xf32>
    %cst_8 = arith.constant 1.250000e-01 : f32
    %8 = vector.broadcast %cst_8 : f32 to vector<1x512xf32>
    %9 = arith.mulf %7, %8 : vector<1x512xf32>
    %10 = arith.mulf %3, %3 : vector<8x512xf32>
    %cst_9 = arith.constant dense<0.000000e+00> : vector<512xf32>
    %11 = vector.multi_reduction <add>, %10, %cst_9 [0] : vector<8x512xf32> to vector<512xf32>
    %12 = vector.shape_cast %11 : vector<512xf32> to vector<1x512xf32>
    %cst_10 = arith.constant 1.250000e-01 : f32
    %13 = vector.broadcast %cst_10 : f32 to vector<1x512xf32>
    %14 = arith.mulf %12, %13 : vector<1x512xf32>
    %15 = arith.mulf %9, %9 : vector<1x512xf32>
    %16 = arith.subf %14, %15 : vector<1x512xf32>
    %cst_11 = arith.constant 0.000000e+00 : f32
    %17 = vector.broadcast %cst_11 : f32 to vector<1x512xf32>
    %18 = arith.maximumf %16, %17 : vector<1x512xf32>
    %cst_12 = arith.constant 9.99999974E-6 : f32
    %19 = vector.broadcast %cst_12 : f32 to vector<1x512xf32>
    %20 = arith.addf %18, %19 : vector<1x512xf32>
    %21 = math.rsqrt %20 : vector<1x512xf32>
    %22 = arith.mulf %4, %21 : vector<1x512xf32>
    %23 = vector.broadcast %22 : vector<1x512xf32> to vector<8x512xf32>
    %24 = arith.mulf %3, %23 : vector<8x512xf32>
    %25 = arith.mulf %9, %22 : vector<1x512xf32>
    %26 = arith.subf %5, %25 : vector<1x512xf32>
    %27 = vector.broadcast %26 : vector<1x512xf32> to vector<8x512xf32>
    %28 = arith.addf %24, %27 : vector<8x512xf32>
    %cst_13 = arith.constant 0.000000e+00 : f32
    %29 = vector.broadcast %cst_13 : f32 to vector<8x512xf32>
    %30 = arith.maximumf %28, %29 : vector<8x512xf32>
    %31 = arith.truncf %30 : vector<8x512xf32> to vector<8x512xbf16>
    %c0_14 = arith.constant 0 : index
    %c0_15 = arith.constant 0 : index
    %32 = vector.load %arg5[%c0_14, %c0_15] : memref<512x256xbf16, #tpu.memory_space<vmem>>, vector<512x256xbf16>
    %cst_16 = arith.constant dense<0.000000e+00> : vector<8x256xf32>
    %33 = tpu.matmul %31, %32, %cst_16 {dimension_numbers = #tpu.dot_dimension_numbers<[1], [0], [0], [1], [0, 0, 1, 1], [], []>} : vector<8x512xbf16>, vector<512x256xbf16>, vector<8x256xf32> -> vector<8x256xf32>
    %c0_17 = arith.constant 0 : index
    %c0_18 = arith.constant 0 : index
    %34 = vector.load %arg6[%c0_17, %c0_18] : memref<1x256xf32, #tpu.memory_space<vmem>>, vector<1x256xf32>
    %c0_19 = arith.constant 0 : index
    %c0_20 = arith.constant 0 : index
    %35 = vector.load %arg7[%c0_19, %c0_20] : memref<1x256xf32, #tpu.memory_space<vmem>>, vector<1x256xf32>
    %cst_21 = arith.constant dense<0.000000e+00> : vector<256xf32>
    %36 = vector.multi_reduction <add>, %33, %cst_21 [0] : vector<8x256xf32> to vector<256xf32>
    %37 = vector.shape_cast %36 : vector<256xf32> to vector<1x256xf32>
    %cst_22 = arith.constant 1.250000e-01 : f32
    %38 = vector.broadcast %cst_22 : f32 to vector<1x256xf32>
    %39 = arith.mulf %37, %38 : vector<1x256xf32>
    %40 = arith.mulf %33, %33 : vector<8x256xf32>
    %cst_23 = arith.constant dense<0.000000e+00> : vector<256xf32>
    %41 = vector.multi_reduction <add>, %40, %cst_23 [0] : vector<8x256xf32> to vector<256xf32>
    %42 = vector.shape_cast %41 : vector<256xf32> to vector<1x256xf32>
    %cst_24 = arith.constant 1.250000e-01 : f32
    %43 = vector.broadcast %cst_24 : f32 to vector<1x256xf32>
    %44 = arith.mulf %42, %43 : vector<1x256xf32>
    %45 = arith.mulf %39, %39 : vector<1x256xf32>
    %46 = arith.subf %44, %45 : vector<1x256xf32>
    %cst_25 = arith.constant 0.000000e+00 : f32
    %47 = vector.broadcast %cst_25 : f32 to vector<1x256xf32>
    %48 = arith.maximumf %46, %47 : vector<1x256xf32>
    %cst_26 = arith.constant 9.99999974E-6 : f32
    %49 = vector.broadcast %cst_26 : f32 to vector<1x256xf32>
    %50 = arith.addf %48, %49 : vector<1x256xf32>
    %51 = math.rsqrt %50 : vector<1x256xf32>
    %52 = arith.mulf %34, %51 : vector<1x256xf32>
    %53 = vector.broadcast %52 : vector<1x256xf32> to vector<8x256xf32>
    %54 = arith.mulf %33, %53 : vector<8x256xf32>
    %55 = arith.mulf %39, %52 : vector<1x256xf32>
    %56 = arith.subf %35, %55 : vector<1x256xf32>
    %57 = vector.broadcast %56 : vector<1x256xf32> to vector<8x256xf32>
    %58 = arith.addf %54, %57 : vector<8x256xf32>
    %cst_27 = arith.constant 0.000000e+00 : f32
    %59 = vector.broadcast %cst_27 : f32 to vector<8x256xf32>
    %60 = arith.maximumf %58, %59 : vector<8x256xf32>
    %61 = arith.truncf %60 : vector<8x256xf32> to vector<8x256xbf16>
    %c0_28 = arith.constant 0 : index
    %c0_29 = arith.constant 0 : index
    %62 = vector.load %arg8[%c0_28, %c0_29] : memref<256x128xbf16, #tpu.memory_space<vmem>>, vector<256x128xbf16>
    %cst_30 = arith.constant dense<0.000000e+00> : vector<8x128xf32>
    %63 = tpu.matmul %61, %62, %cst_30 {dimension_numbers = #tpu.dot_dimension_numbers<[1], [0], [0], [1], [0, 0, 1, 1], [], []>} : vector<8x256xbf16>, vector<256x128xbf16>, vector<8x128xf32> -> vector<8x128xf32>
    %c0_31 = arith.constant 0 : index
    %c0_32 = arith.constant 0 : index
    %64 = vector.load %arg9[%c0_31, %c0_32] : memref<1x128xf32, #tpu.memory_space<vmem>>, vector<1x128xf32>
    %65 = vector.broadcast %64 : vector<1x128xf32> to vector<8x128xf32>
    %66 = arith.addf %63, %65 : vector<8x128xf32>
    %c0_33 = arith.constant 0 : index
    %c0_34 = arith.constant 0 : index
    %67 = vector.load %arg10[%c0_33, %c0_34] : memref<8x128xf32, #tpu.memory_space<vmem>>, vector<8x128xf32>
    tpu.vector_store %arg10[%c0_33, %c0_34], %66 {strides = array<i32>} : memref<8x128xf32, #tpu.memory_space<vmem>>, vector<8x128xf32>,
    return
  }
  func.func @transform_0(%arg0: i32) -> (i32, i32) {
    %c0_i32 = arith.constant 0 : i32
    %c0_i32_0 = arith.constant 0 : i32
    %c0_i32_1 = arith.constant 0 : i32
    return %c0_i32, %c0_i32_0 : i32, i32
  }
  func.func @transform_1(%arg0: i32) -> (i32, i32) {
    %c0_i32 = arith.constant 0 : i32
    %c0_i32_0 = arith.constant 0 : i32
    %c0_i32_1 = arith.constant 0 : i32
    return %c0_i32, %c0_i32_0 : i32, i32
  }
  func.func @transform_2(%arg0: i32) -> (i32, i32) {
    %c0_i32 = arith.constant 0 : i32
    %c0_i32_0 = arith.constant 0 : i32
    %c0_i32_1 = arith.constant 0 : i32
    return %c0_i32, %c0_i32_0 : i32, i32
  }
  func.func @transform_3(%arg0: i32) -> (i32, i32) {
    %c0_i32 = arith.constant 0 : i32
    %c0_i32_0 = arith.constant 0 : i32
    %c0_i32_1 = arith.constant 0 : i32
    return %c0_i32, %c0_i32_0 : i32, i32
  }
  func.func @transform_4(%arg0: i32) -> (i32, i32) {
    %c0_i32 = arith.constant 0 : i32
    %c0_i32_0 = arith.constant 0 : i32
    %c0_i32_1 = arith.constant 0 : i32
    return %c0_i32, %c0_i32_0 : i32, i32
  }
  func.func @transform_5(%arg0: i32) -> (i32, i32) {
    %c0_i32 = arith.constant 0 : i32
    %c0_i32_0 = arith.constant 0 : i32
    %c0_i32_1 = arith.constant 0 : i32
    return %c0_i32, %c0_i32_0 : i32, i32
  }
  func.func @transform_6(%arg0: i32) -> (i32, i32) {
    %c0_i32 = arith.constant 0 : i32
    %c0_i32_0 = arith.constant 0 : i32
    %c0_i32_1 = arith.constant 0 : i32
    return %c0_i32, %c0_i32_0 : i32, i32
  }
  func.func @transform_7(%arg0: i32) -> (i32, i32) {
    %c0_i32 = arith.constant 0 : i32
    %c0_i32_0 = arith.constant 0 : i32
    %c0_i32_1 = arith.constant 0 : i32
    return %c0_i32, %c0_i32_0 : i32, i32
  }
  func.func @transform_8(%arg0: i32) -> (i32, i32) {
    %c0_i32 = arith.constant 0 : i32
    %c0_i32_0 = arith.constant 0 : i32
    %c0_i32_1 = arith.constant 0 : i32
    return %c0_i32, %c0_i32_0 : i32, i32
  }
  func.func @transform_9(%arg0: i32) -> (i32, i32) {
    %c0_i32 = arith.constant 0 : i32
    %c0_i32_0 = arith.constant 0 : i32
    %c0_i32_1 = arith.constant 0 : i32
    return %c0_i32, %c0_i32_0 : i32, i32
  }
}

</mosaic_0001>

<llo_original>
// kernel: tpu_custom_call.1
$region0: #{tpu_custom_call.1}
  #allocation0 [shape = 'u32[]', space=smem, size = 0x4, offset = 0x4, fixed_abs, tag = 'smem constant byte address 0x4 - core index']
  #allocation1 [shape = 'u32[144,128]{1,0:T(1,128)}', space=vmem, size = 0x12000, scoped, tag = 'internal scratch']
  %s0 = inlined_call_operand.hbm [shape: f32[8,32], index: 0, kind: input, shape index: {}]
  %s1 = inlined_call_operand.hbm [shape: bf16[32,512], index: 1, kind: input, shape index: {}]
  %s2 = inlined_call_operand.hbm [shape: f32[1,512], index: 2, kind: input, shape index: {}]
  %s3 = inlined_call_operand.vmem [shape: f32[1,512], index: 3, kind: input, shape index: {}]
  %s4 = inlined_call_operand.hbm [shape: bf16[512,256], index: 4, kind: input, shape index: {}]
  %s5 = inlined_call_operand.vmem [shape: f32[1,256], index: 5, kind: input, shape index: {}]
  %s6 = inlined_call_operand.vmem [shape: f32[1,256], index: 6, kind: input, shape index: {}]
  %s7 = inlined_call_operand.hbm [shape: bf16[256,128], index: 7, kind: input, shape index: {}]
  %s8 = inlined_call_operand.vmem [shape: f32[1,128], index: 8, kind: input, shape index: {}]
  %s9 = inlined_call_operand.hbm [shape: f32[8,128], index: 9, kind: output, shape index: {}]
  %s10 = sld [smem:[#allocation0]]
  $region66: #{tpu_custom_call.1} parent=0
    _
  %s12 = ssub.s32 1, %s10
  %s13 = scalar_select 0, %s12, %s10
  $region1: #{tpu_custom_call.1} parent=0
    #allocation2 [shape = 'u8[4096]{0}', space=vmem, size = 0x1000, scoped, tag = 'input window, operand 0, single buffered']
    #allocation3 [shape = 's32[1]{0}', space=sflag, size = 0x4, scoped, tag = 'scoped memory for tpu_custom_call.1']
    #allocation4 [shape = 's32[1]{0}', space=sflag, size = 0x4, scoped, tag = 'scoped memory for tpu_custom_call.1']
    #allocation5 [shape = 'u8[32768]{0}', space=vmem, size = 0x8000, scoped, tag = 'input window, operand 1, single buffered']
    #allocation6 [shape = 's32[1]{0}', space=sflag, size = 0x4, scoped, tag = 'scoped memory for tpu_custom_call.1']
    #allocation7 [shape = 'u8[2048]{0}', space=vmem, size = 0x800, scoped, tag = 'input window, operand 2, single buffered']
    #allocation8 [shape = 'u8[262144]{0}', space=vmem, size = 0x40000, scoped, tag = 'input window, operand 4, single buffered']
    #allocation9 [shape = 's32[1]{0}', space=sflag, size = 0x4, scoped, tag = 'scoped memory for tpu_custom_call.1']
    #allocation10 [shape = 'u8[65536]{0}', space=vmem, size = 0x10000, scoped, tag = 'input window, operand 7, single buffered']
    #allocation11 [shape = 'u8[4096]{0}', space=vmem, size = 0x1000, scoped, tag = 'output window, operand 0, single buffered']
    %14 = vsyncpa [#allocation3], 0
    %15 = vsyncpa [#allocation6], 0
    %16 = vsyncpa [#allocation9], 0
    %17 = vsyncpa [#allocation4], 0
    // Predicated region
    $region2: #{tpu_custom_call.1} parent=1 // pred_check
      _
    $region3: #{tpu_custom_call.1} parent=1 // pred_check_branch
      %19 = sbr.rel (0) target = $region5
    $region4: #{tpu_custom_call.1} parent=1 // pred_region
      %s21 = ssub.s32 128, 128
      %22 = vsyncadd [#allocation3], %s21
      %s24 = sshll.u32 [#allocation2], 4
      %s25 = int_to_ptr.vmem [resolvable:$true] %s24
      %27 = dma.hbm_to_vmem [thread:$0]  %s0, 128, %s25, [#allocation3]
    $region5: #{tpu_custom_call.1} parent=1 // pred_fallthru
      _
    // Predicated region
    $region6: #{tpu_custom_call.1} parent=1 // pred_check
      _
    $region7: #{tpu_custom_call.1} parent=1 // pred_check_branch
      %29 = sbr.rel (0) target = $region9
    $region8: #{tpu_custom_call.1} parent=1 // pred_region
      %s31 = ssub.s32 1024, 1024
      %32 = vsyncadd [#allocation6], %s31
      %s33 = sshll.u32 [#allocation5], 4
      %s34 = int_to_ptr.vmem [resolvable:$true] %s33
      %39 = dma.hbm_to_vmem [thread:$0]  %s1, 1024, %s34, [#allocation6], 256, 256, 16
    $region9: #{tpu_custom_call.1} parent=1 // pred_fallthru
      _
    // Predicated region
    $region10: #{tpu_custom_call.1} parent=1 // pred_check
      _
    $region11: #{tpu_custom_call.1} parent=1 // pred_check_branch
      %41 = sbr.rel (0) target = $region13
    $region12: #{tpu_custom_call.1} parent=1 // pred_region
      %s43 = ssub.s32 64, 64
      %44 = vsyncadd [#allocation6], %s43
      %s46 = sshll.u32 [#allocation7], 4
      %s47 = int_to_ptr.vmem [resolvable:$true] %s46
      %49 = dma.hbm_to_vmem [thread:$0]  %s2, 64, %s47, [#allocation6]
    $region13: #{tpu_custom_call.1} parent=1 // pred_fallthru
      _
    // Predicated region
    $region14: #{tpu_custom_call.1} parent=1 // pred_check
      _
    $region15: #{tpu_custom_call.1} parent=1 // pred_check_branch
      %51 = sbr.rel (0) target = $region17
    $region16: #{tpu_custom_call.1} parent=1 // pred_region
      _
    $region17: #{tpu_custom_call.1} parent=1 // pred_fallthru
      _
    // Predicated region
    $region18: #{tpu_custom_call.1} parent=1 // pred_check
      _
    $region19: #{tpu_custom_call.1} parent=1 // pred_check_branch
      %53 = sbr.rel (0) target = $region21
    $region20: #{tpu_custom_call.1} parent=1 // pred_region
      %s55 = ssub.s32 8192, 8192
      %56 = vsyncadd [#allocation9], %s55
      %s57 = sshll.u32 [#allocation8], 4
      %s58 = int_to_ptr.vmem [resolvable:$true] %s57
      %63 = dma.hbm_to_vmem [thread:$0]  %s4, 8192, %s58, [#allocation9], 128, 128, 8
    $region21: #{tpu_custom_call.1} parent=1 // pred_fallthru
      _
    // Predicated region
    $region22: #{tpu_custom_call.1} parent=1 // pred_check
      _
    $region23: #{tpu_custom_call.1} parent=1 // pred_check_branch
      %65 = sbr.rel (0) target = $region25
    $region24: #{tpu_custom_call.1} parent=1 // pred_region
      _
    $region25: #{tpu_custom_call.1} parent=1 // pred_fallthru
      _
    // Predicated region
    $region26: #{tpu_custom_call.1} parent=1 // pred_check
      _
    $region27: #{tpu_custom_call.1} parent=1 // pred_check_branch
      %67 = sbr.rel (0) target = $region29
    $region28: #{tpu_custom_call.1} parent=1 // pred_region
      _
    $region29: #{tpu_custom_call.1} parent=1 // pred_fallthru
      _
    // Predicated region
    $region30: #{tpu_custom_call.1} parent=1 // pred_check
      _
    $region31: #{tpu_custom_call.1} parent=1 // pred_check_branch
      %69 = sbr.rel (0) target = $region33
    $region32: #{tpu_custom_call.1} parent=1 // pred_region
      %s71 = ssub.s32 2048, 2048
      %72 = vsyncadd [#allocation9], %s71
      %s73 = sshll.u32 [#allocation10], 4
      %s74 = int_to_ptr.vmem [resolvable:$true] %s73
      %79 = dma.hbm_to_vmem [thread:$0]  %s7, 2048, %s74, [#allocation9], 64, 64, 4
    $region33: #{tpu_custom_call.1} parent=1 // pred_fallthru
      _
    // Predicated region
    $region34: #{tpu_custom_call.1} parent=1 // pred_check
      _
    $region35: #{tpu_custom_call.1} parent=1 // pred_check_branch
      %81 = sbr.rel (0) target = $region37
    $region36: #{tpu_custom_call.1} parent=1 // pred_region
      _
    $region37: #{tpu_custom_call.1} parent=1 // pred_fallthru
      _
    // Predicated region
    $region38: #{tpu_custom_call.1} parent=1 // pred_check
      _
    $region39: #{tpu_custom_call.1} parent=1 // pred_check_branch
      %83 = sbr.rel (0) target = $region41
    $region40: #{tpu_custom_call.1} parent=1 // pred_region
      %84 = dma.done [#allocation3], 128
    $region41: #{tpu_custom_call.1} parent=1 // pred_fallthru
      _
    // Predicated region
    $region42: #{tpu_custom_call.1} parent=1 // pred_check
      _
    $region43: #{tpu_custom_call.1} parent=1 // pred_check_branch
      %86 = sbr.rel (0) target = $region45
    $region44: #{tpu_custom_call.1} parent=1 // pred_region
      %87 = dma.done [#allocation6], 1024
    $region45: #{tpu_custom_call.1} parent=1 // pred_fallthru
      _
    // Predicated region
    $region46: #{tpu_custom_call.1} parent=1 // pred_check
      _
    $region47: #{tpu_custom_call.1} parent=1 // pred_check_branch
      %89 = sbr.rel (0) target = $region49
    $region48: #{tpu_custom_call.1} parent=1 // pred_region
      %90 = dma.done [#allocation6], 64
    $region49: #{tpu_custom_call.1} parent=1 // pred_fallthru
      _
    // Predicated region
    $region50: #{tpu_custom_call.1} parent=1 // pred_check
      _
    $region51: #{tpu_custom_call.1} parent=1 // pred_check_branch
      %92 = sbr.rel (0) target = $region53
    $region52: #{tpu_custom_call.1} parent=1 // pred_region
      %93 = dma.done [#allocation9], 8192
    $region53: #{tpu_custom_call.1} parent=1 // pred_fallthru
      _
    // Predicated region
    $region54: #{tpu_custom_call.1} parent=1 // pred_check
      _
    $region55: #{tpu_custom_call.1} parent=1 // pred_check_branch
      %95 = sbr.rel (0) target = $region57
    $region56: #{tpu_custom_call.1} parent=1 // pred_region
      %96 = dma.done [#allocation9], 2048
    $region57: #{tpu_custom_call.1} parent=1 // pred_fallthru
      _
    %v98 = vld [vmem:[#allocation2] sm:$0xff]
    %v99 = vpack.c.bf16 %v98, %v98
    %v100 = vld [vmem:[#allocation5] sm:$0xff]
    %v101 = vld [vmem:[#allocation5 + $0x8] sm:$0xff]
    %v102 = vld [vmem:[#allocation5 + $0x10] sm:$0xff]
    %v103 = vld [vmem:[#allocation5 + $0x18] sm:$0xff]
    %v104 = vld [vmem:[#allocation5 + $0x20] sm:$0xff]
    %v105 = vld [vmem:[#allocation5 + $0x28] sm:$0xff]
    %v106 = vld [vmem:[#allocation5 + $0x30] sm:$0xff]
    %v107 = vld [vmem:[#allocation5 + $0x38] sm:$0xff]
    %v116 = vunpack.c.l.b16 %v100
    %v117 = vunpack.c.h.b16 %v100
    %v118 = vunpack.c.l.b16 %v101
    %v119 = vunpack.c.h.b16 %v101
    %v120 = vunpack.c.l.b16 %v102
    %v121 = vunpack.c.h.b16 %v102
    %v122 = vunpack.c.l.b16 %v103
    %v123 = vunpack.c.h.b16 %v103
    %v124 = vunpack.c.l.b16 %v104
    %v125 = vunpack.c.h.b16 %v104
    %v126 = vunpack.c.l.b16 %v105
    %v127 = vunpack.c.h.b16 %v105
    %v128 = vunpack.c.l.b16 %v106
    %v129 = vunpack.c.h.b16 %v106
    %v130 = vunpack.c.l.b16 %v107
    %v131 = vunpack.c.h.b16 %v107
    %v132 = vpack.c.b16 %v120, %v116
    %v133 = vpack.c.b16 %v121, %v117
    %v134 = vpack.c.b16 %v122, %v118
    %v135 = vpack.c.b16 %v123, %v119
    %v136 = vpack.c.b16 %v128, %v124
    %v137 = vpack.c.b16 %v129, %v125
    %v138 = vpack.c.b16 %v130, %v126
    %v139 = vpack.c.b16 %v131, %v127
    %vm148 = vcmask 261120
    %v150 = vsel %vm148, %v99, 0
    %152 = vmatprep.subr.bf16.mxu0 0
    %153 = vmatpush1.bf16.msra.mxu0 0
    %154 = vmatprep.subr.bf16.mxu0 0
    %155 = vmatpush1.bf16.msra.mxu0 0
    %156 = vmatprep.subr.bf16.mxu0 0
    %157 = vmatpush1.bf16.msra.mxu0 0
    %158 = vmatprep.subr.bf16.mxu0 0
    %159 = vmatpush1.bf16.msra.mxu0 0
    %160 = vmatprep.subr.bf16.mxu0 0
    %161 = vmatpush1.bf16.msra.mxu0 0
    %162 = vmatprep.subr.bf16.mxu0 0
    %163 = vmatpush1.bf16.msra.mxu0 0
    %164 = vmatprep.subr.bf16.mxu0 %v137
    %165 = vmatpush1.bf16.msra.mxu0 %v136
    %166 = vmatprep.subr.bf16.mxu0 %v133
    %167 = vmatpush1.bf16.msra.mxu0 %v132
    %168 = vmatprep.subr.bf16.mxu0 0
    %169 = vmatpush2.bf16.msra.mxu0 0
    %170 = vmatprep.subr.bf16.mxu0 0
    %171 = vmatpush2.bf16.msra.mxu0 0
    %172 = vmatprep.subr.bf16.mxu0 0
    %173 = vmatpush2.bf16.msra.mxu0 0
    %174 = vmatprep.subr.bf16.mxu0 0
    %175 = vmatpush2.bf16.msra.mxu0 0
    %176 = vmatprep.subr.bf16.mxu0 0
    %177 = vmatpush2.bf16.msra.mxu0 0
    %178 = vmatprep.subr.bf16.mxu0 0
    %179 = vmatpush2.bf16.msra.mxu0 0
    %180 = vmatprep.subr.bf16.mxu0 0
    %181 = vmatpush2.bf16.msra.mxu0 0
    %182 = vmatprep.subr.bf16.mxu0 0
    %183 = vmatpush2.bf16.msra.mxu0 0
    %184 = vmatprep.mubr.bf16.mxu0 0
    %185 = vmatmul.mubr.bf16.gmra.mxu0 %v150
    %v186 = vpop.f32.mrf.mxu0
    %v187 = vadd.f32 0.0, %v186
    %v188 = vpop.f32.mrf.mxu0
    %v189 = vadd.f32 0.0, %v188
    %v190 = vpop.f32.mrf.mxu0
    %v191 = vpop.f32.mrf.mxu0
    %192 = vdwg.mxu0
    %193 = vmatprep.subr.bf16.mxu0 0
    %194 = vmatpush1.bf16.msra.mxu0 0
    %195 = vmatprep.subr.bf16.mxu0 0
    %196 = vmatpush1.bf16.msra.mxu0 0
    %197 = vmatprep.subr.bf16.mxu0 0
    %198 = vmatpush1.bf16.msra.mxu0 0
    %199 = vmatprep.subr.bf16.mxu0 0
    %200 = vmatpush1.bf16.msra.mxu0 0
    %201 = vmatprep.subr.bf16.mxu0 0
    %202 = vmatpush1.bf16.msra.mxu0 0
    %203 = vmatprep.subr.bf16.mxu0 0
    %204 = vmatpush1.bf16.msra.mxu0 0
    %205 = vmatprep.subr.bf16.mxu0 %v139
    %206 = vmatpush1.bf16.msra.mxu0 %v138
    %207 = vmatprep.subr.bf16.mxu0 %v135
    %208 = vmatpush1.bf16.msra.mxu0 %v134
    %209 = vmatprep.subr.bf16.mxu0 0
    %210 = vmatpush2.bf16.msra.mxu0 0
    %211 = vmatprep.subr.bf16.mxu0 0
    %212 = vmatpush2.bf16.msra.mxu0 0
    %213 = vmatprep.subr.bf16.mxu0 0
    %214 = vmatpush2.bf16.msra.mxu0 0
    %215 = vmatprep.subr.bf16.mxu0 0
    %216 = vmatpush2.bf16.msra.mxu0 0
    %217 = vmatprep.subr.bf16.mxu0 0
    %218 = vmatpush2.bf16.msra.mxu0 0
    %219 = vmatprep.subr.bf16.mxu0 0
    %220 = vmatpush2.bf16.msra.mxu0 0
    %221 = vmatprep.subr.bf16.mxu0 0
    %222 = vmatpush2.bf16.msra.mxu0 0
    %223 = vmatprep.subr.bf16.mxu0 0
    %224 = vmatpush2.bf16.msra.mxu0 0
    %225 = vmatprep.mubr.bf16.mxu0 0
    %226 = vmatmul.mubr.bf16.gmra.mxu0 %v150
    %v227 = vpop.f32.mrf.mxu0
    %v228 = vadd.f32 0.0, %v227
    %v229 = vpop.f32.mrf.mxu0
    %v230 = vadd.f32 0.0, %v229
    %v231 = vpop.f32.mrf.mxu0
    %v232 = vpop.f32.mrf.mxu0
    %233 = vdwg.mxu0
    %v234 = vld [vmem:[#allocation7] sm:$0xf]
    %v235 = vld [vmem:[%s3] sm:$0xf]
    %v236 = vrot.slane %v187, 4
    %v237 = vadd.f32 %v187, %v236
    %v238 = vrot.slane %v237, 2
    %v239 = vadd.f32 %v237, %v238
    %v240 = vrot.slane %v239, 1
    %v241 = vadd.f32 %v239, %v240
    %v242 = vrot.slane %v189, 4
    %v243 = vadd.f32 %v189, %v242
    %v244 = vrot.slane %v243, 2
    %v245 = vadd.f32 %v243, %v244
    %v246 = vrot.slane %v245, 1
    %v247 = vadd.f32 %v245, %v246
    %v248 = vrot.slane %v228, 4
    %v249 = vadd.f32 %v228, %v248
    %v250 = vrot.slane %v249, 2
    %v251 = vadd.f32 %v249, %v250
    %v252 = vrot.slane %v251, 1
    %v253 = vadd.f32 %v251, %v252
    %v254 = vrot.slane %v230, 4
    %v255 = vadd.f32 %v230, %v254
    %v256 = vrot.slane %v255, 2
    %v257 = vadd.f32 %v255, %v256
    %v258 = vrot.slane %v257, 1
    %v259 = vadd.f32 %v257, %v258
    %v260 = vmul.f32 %v241, 0.125
    %v261 = vmul.f32 %v247, 0.125
    %v262 = vmul.f32 %v253, 0.125
    %v263 = vmul.f32 %v259, 0.125
    %v264 = vmul.f32 %v187, %v187
    %v265 = vmul.f32 %v189, %v189
    %v266 = vmul.f32 %v228, %v228
    %v267 = vmul.f32 %v230, %v230
    %v268 = vrot.slane %v264, 4
    %v269 = vadd.f32 %v264, %v268
    %v270 = vrot.slane %v269, 2
    %v271 = vadd.f32 %v269, %v270
    %v272 = vrot.slane %v271, 1
    %v273 = vadd.f32 %v271, %v272
    %v274 = vrot.slane %v265, 4
    %v275 = vadd.f32 %v265, %v274
    %v276 = vrot.slane %v275, 2
    %v277 = vadd.f32 %v275, %v276
    %v278 = vrot.slane %v277, 1
    %v279 = vadd.f32 %v277, %v278
    %v280 = vrot.slane %v266, 4
    %v281 = vadd.f32 %v266, %v280
    %v282 = vrot.slane %v281, 2
    %v283 = vadd.f32 %v281, %v282
    %v284 = vrot.slane %v283, 1
    %v285 = vadd.f32 %v283, %v284
    %v286 = vrot.slane %v267, 4
    %v287 = vadd.f32 %v267, %v286
    %v288 = vrot.slane %v287, 2
    %v289 = vadd.f32 %v287, %v288
    %v290 = vrot.slane %v289, 1
    %v291 = vadd.f32 %v289, %v290
    %v292 = vmul.f32 %v273, 0.125
    %v293 = vmul.f32 %v279, 0.125
    %v294 = vmul.f32 %v285, 0.125
    %v295 = vmul.f32 %v291, 0.125
    %v296 = vmul.f32 %v260, %v260
    %v297 = vmul.f32 %v261, %v261
    %v298 = vmul.f32 %v262, %v262
    %v299 = vmul.f32 %v263, %v263
    %v300 = vsub.f32 %v292, %v296
    %v301 = vsub.f32 %v293, %v297
    %v302 = vsub.f32 %v294, %v298
    %v303 = vsub.f32 %v295, %v299
    %v304 = vmax.f32 %v300, 0.0
    %v305 = vmax.f32 %v301, 0.0
    %v306 = vmax.f32 %v302, 0.0
    %v307 = vmax.f32 %v303, 0.0
    %v308 = vadd.f32 %v304, 1e-05
    %v309 = vadd.f32 %v305, 1e-05
    %v310 = vadd.f32 %v306, 1e-05
    %v311 = vadd.f32 %v307, 1e-05
    %v312 = vrsqrt.pop %v308
    %v313 = vrsqrt.pop %v309
    %v314 = vrsqrt.pop %v310
    %v315 = vrsqrt.pop %v311
    %v320 = vcombine.low %v312, %v313
    %v321 = vcombine.low %v314, %v315
    %v323 = vunpack.c.l.s4 1966171168
    %v324 = vunpack.c.0.s8 %v323
    %v325 = vlaneseq
    %v326 = vshrl.u32 %v325, 7
    %v327 = vsub.s32 %v324, %v326
    %v328 = vrot.slane %v320, %v327
    %v330 = vunpack.c.l.s4 1966171168
    %v331 = vunpack.c.0.s8 %v330
    %v332 = vlaneseq
    %v333 = vshrl.u32 %v332, 7
    %v334 = vsub.s32 %v331, %v333
    %v335 = vrot.slane %v321, %v334
    %v336 = vcombine.low %v328, %v335
    %v338 = vunpack.c.l.s4 1966171168
    %v339 = vunpack.c.0.s8 %v338
    %v340 = vlaneseq
    %v341 = vshrl.u32 %v340, 7
    %v342 = vsub.s32 %v339, %v341
    %v343 = vrot.slane %v336, %v342
    %v345 = vmul.f32 %v234, %v343
    %v347 = vlaneseq
    %v348 = vshrl.u32 %v347, 7
    %v349 = vsub.s32 0, %v348
    %v350 = vrot.slane %v345, %v349
    %v351 = vlaneseq
    %v352 = vshrl.u32 %v351, 7
    %v353 = vsub.s32 1, %v352
    %v354 = vrot.slane %v345, %v353
    %v355 = vlaneseq
    %v356 = vshrl.u32 %v355, 7
    %v357 = vsub.s32 2, %v356
    %v358 = vrot.slane %v345, %v357
    %v359 = vlaneseq
    %v360 = vshrl.u32 %v359, 7
    %v361 = vsub.s32 3, %v360
    %v362 = vrot.slane %v345, %v361
    %v367 = vmul.f32 %v187, %v350
    %v368 = vmul.f32 %v189, %v354
    %v369 = vmul.f32 %v228, %v358
    %v370 = vmul.f32 %v230, %v362
    %v371 = vmul.f32 %v260, %v350
    %v372 = vmul.f32 %v261, %v354
    %v373 = vmul.f32 %v262, %v358
    %v374 = vmul.f32 %v263, %v362
    %v379 = vcombine.low %v371, %v372
    %v380 = vcombine.low %v373, %v374
    %v382 = vunpack.c.l.s4 1966171168
    %v383 = vunpack.c.0.s8 %v382
    %v384 = vlaneseq
    %v385 = vshrl.u32 %v384, 7
    %v386 = vsub.s32 %v383, %v385
    %v387 = vrot.slane %v379, %v386
    %v389 = vunpack.c.l.s4 1966171168
    %v390 = vunpack.c.0.s8 %v389
    %v391 = vlaneseq
    %v392 = vshrl.u32 %v391, 7
    %v393 = vsub.s32 %v390, %v392
    %v394 = vrot.slane %v380, %v393
    %v395 = vcombine.low %v387, %v394
    %v397 = vunpack.c.l.s4 1966171168
    %v398 = vunpack.c.0.s8 %v397
    %v399 = vlaneseq
    %v400 = vshrl.u32 %v399, 7
    %v401 = vsub.s32 %v398, %v400
    %v402 = vrot.slane %v395, %v401
    %v404 = vsub.f32 %v235, %v402
    %v406 = vlaneseq
    %v407 = vshrl.u32 %v406, 7
    %v408 = vsub.s32 0, %v407
    %v409 = vrot.slane %v404, %v408
    %v410 = vlaneseq
    %v411 = vshrl.u32 %v410, 7
    %v412 = vsub.s32 1, %v411
    %v413 = vrot.slane %v404, %v412
    %v414 = vlaneseq
    %v415 = vshrl.u32 %v414, 7
    %v416 = vsub.s32 2, %v415
    %v417 = vrot.slane %v404, %v416
    %v418 = vlaneseq
    %v419 = vshrl.u32 %v418, 7
    %v420 = vsub.s32 3, %v419
    %v421 = vrot.slane %v404, %v420
    %v426 = vadd.f32 %v367, %v409
    %v427 = vadd.f32 %v368, %v413
    %v428 = vadd.f32 %v369, %v417
    %v429 = vadd.f32 %v370, %v421
    %v430 = vmax.f32 %v426, 0.0
    %v431 = vmax.f32 %v427, 0.0
    %v432 = vmax.f32 %v428, 0.0
    %v433 = vmax.f32 %v429, 0.0
    %v434 = vpack.c.bf16 %v430, %v430
    %v435 = vpack.c.bf16 %v431, %v431
    %v436 = vpack.c.bf16 %v432, %v432
    %v437 = vpack.c.bf16 %v433, %v433
    %v438 = vld [vmem:[#allocation8] sm:$0xff]
    %v439 = vld [vmem:[#allocation8 + $0x8] sm:$0xff]
    %v440 = vld [vmem:[#allocation8 + $0x10] sm:$0xff]
    %v441 = vld [vmem:[#allocation8 + $0x18] sm:$0xff]
    %v442 = vld [vmem:[#allocation8 + $0x20] sm:$0xff]
    %v443 = vld [vmem:[#allocation8 + $0x28] sm:$0xff]
    %v444 = vld [vmem:[#allocation8 + $0x30] sm:$0xff]
    %v445 = vld [vmem:[#allocation8 + $0x38] sm:$0xff]
    %v446 = vld [vmem:[#allocation8 + $0x40] sm:$0xff]
    %v447 = vld [vmem:[#allocation8 + $0x48] sm:$0xff]
    %v448 = vld [vmem:[#allocation8 + $0x50] sm:$0xff]
    %v449 = vld [vmem:[#allocation8 + $0x58] sm:$0xff]
    %v450 = vld [vmem:[#allocation8 + $0x60] sm:$0xff]
    %v451 = vld [vmem:[#allocation8 + $0x68] sm:$0xff]
    %v452 = vld [vmem:[#allocation8 + $0x70] sm:$0xff]
    %v453 = vld [vmem:[#allocation8 + $0x78] sm:$0xff]
    %v454 = vld [vmem:[#allocation8 + $0x80] sm:$0xff]
    %v455 = vld [vmem:[#allocation8 + $0x88] sm:$0xff]
    %v456 = vld [vmem:[#allocation8 + $0x90] sm:$0xff]
    %v457 = vld [vmem:[#allocation8 + $0x98] sm:$0xff]
    %v458 = vld [vmem:[#allocation8 + $0xa0] sm:$0xff]
    %v459 = vld [vmem:[#allocation8 + $0xa8] sm:$0xff]
    %v460 = vld [vmem:[#allocation8 + $0xb0] sm:$0xff]
    %v461 = vld [vmem:[#allocation8 + $0xb8] sm:$0xff]
    %v462 = vld [vmem:[#allocation8 + $0xc0] sm:$0xff]
    %v463 = vld [vmem:[#allocation8 + $0xc8] sm:$0xff]
    %v464 = vld [vmem:[#allocation8 + $0xd0] sm:$0xff]
    %v465 = vld [vmem:[#allocation8 + $0xd8] sm:$0xff]
    %v466 = vld [vmem:[#allocation8 + $0xe0] sm:$0xff]
    %v467 = vld [vmem:[#allocation8 + $0xe8] sm:$0xff]
    %v468 = vld [vmem:[#allocation8 + $0xf0] sm:$0xff]
    %v469 = vld [vmem:[#allocation8 + $0xf8] sm:$0xff]
    %v470 = vld [vmem:[#allocation8 + $0x100] sm:$0xff]
    %v471 = vld [vmem:[#allocation8 + $0x108] sm:$0xff]
    %v472 = vld [vmem:[#allocation8 + $0x110] sm:$0xff]
    %v473 = vld [vmem:[#allocation8 + $0x118] sm:$0xff]
    %v474 = vld [vmem:[#allocation8 + $0x120] sm:$0xff]
    %v475 = vld [vmem:[#allocation8 + $0x128] sm:$0xff]
    %v476 = vld [vmem:[#allocation8 + $0x130] sm:$0xff]
    %v477 = vld [vmem:[#allocation8 + $0x138] sm:$0xff]
    %v478 = vld [vmem:[#allocation8 + $0x140] sm:$0xff]
    %v479 = vld [vmem:[#allocation8 + $0x148] sm:$0xff]
    %v480 = vld [vmem:[#allocation8 + $0x150] sm:$0xff]
    %v481 = vld [vmem:[#allocation8 + $0x158] sm:$0xff]
    %v482 = vld [vmem:[#allocation8 + $0x160] sm:$0xff]
    %v483 = vld [vmem:[#allocation8 + $0x168] sm:$0xff]
    %v484 = vld [vmem:[#allocation8 + $0x170] sm:$0xff]
    %v485 = vld [vmem:[#allocation8 + $0x178] sm:$0xff]
    %v486 = vld [vmem:[#allocation8 + $0x180] sm:$0xff]
    %v487 = vld [vmem:[#allocation8 + $0x188] sm:$0xff]
    %v488 = vld [vmem:[#allocation8 + $0x190] sm:$0xff]
    %v489 = vld [vmem:[#allocation8 + $0x198] sm:$0xff]
    %v490 = vld [vmem:[#allocation8 + $0x1a0] sm:$0xff]
    %v491 = vld [vmem:[#allocation8 + $0x1a8] sm:$0xff]
    %v492 = vld [vmem:[#allocation8 + $0x1b0] sm:$0xff]
    %v493 = vld [vmem:[#allocation8 + $0x1b8] sm:$0xff]
    %v494 = vld [vmem:[#allocation8 + $0x1c0] sm:$0xff]
    %v495 = vld [vmem:[#allocation8 + $0x1c8] sm:$0xff]
    %v496 = vld [vmem:[#allocation8 + $0x1d0] sm:$0xff]
    %v497 = vld [vmem:[#allocation8 + $0x1d8] sm:$0xff]
    %v498 = vld [vmem:[#allocation8 + $0x1e0] sm:$0xff]
    %v499 = vld [vmem:[#allocation8 + $0x1e8] sm:$0xff]
    %v500 = vld [vmem:[#allocation8 + $0x1f0] sm:$0xff]
    %v501 = vld [vmem:[#allocation8 + $0x1f8] sm:$0xff]
    %v566 = vunpack.c.l.b16 %v438
    %v567 = vunpack.c.h.b16 %v438
    %v568 = vunpack.c.l.b16 %v439
    %v569 = vunpack.c.h.b16 %v439
    %v570 = vunpack.c.l.b16 %v440
    %v571 = vunpack.c.h.b16 %v440
    %v572 = vunpack.c.l.b16 %v441
    %v573 = vunpack.c.h.b16 %v441
    %v574 = vunpack.c.l.b16 %v442
    %v575 = vunpack.c.h.b16 %v442
    %v576 = vunpack.c.l.b16 %v443
    %v577 = vunpack.c.h.b16 %v443
    %v578 = vunpack.c.l.b16 %v444
    %v579 = vunpack.c.h.b16 %v444
    %v580 = vunpack.c.l.b16 %v445
    %v581 = vunpack.c.h.b16 %v445
    %v582 = vunpack.c.l.b16 %v446
    %v583 = vunpack.c.h.b16 %v446
    %v584 = vunpack.c.l.b16 %v447
    %v585 = vunpack.c.h.b16 %v447
    %v586 = vunpack.c.l.b16 %v448
    %v587 = vunpack.c.h.b16 %v448
    %v588 = vunpack.c.l.b16 %v449
    %v589 = vunpack.c.h.b16 %v449
    %v590 = vunpack.c.l.b16 %v450
    %v591 = vunpack.c.h.b16 %v450
    %v592 = vunpack.c.l.b16 %v451
    %v593 = vunpack.c.h.b16 %v451
    %v594 = vunpack.c.l.b16 %v452
    %v595 = vunpack.c.h.b16 %v452
    %v596 = vunpack.c.l.b16 %v453
    %v597 = vunpack.c.h.b16 %v453
    %v598 = vunpack.c.l.b16 %v454
    %v599 = vunpack.c.h.b16 %v454
    %v600 = vunpack.c.l.b16 %v455
    %v601 = vunpack.c.h.b16 %v455
    %v602 = vunpack.c.l.b16 %v456
    %v603 = vunpack.c.h.b16 %v456
    %v604 = vunpack.c.l.b16 %v457
    %v605 = vunpack.c.h.b16 %v457
    %v606 = vunpack.c.l.b16 %v458
    %v607 = vunpack.c.h.b16 %v458
    %v608 = vunpack.c.l.b16 %v459
    %v609 = vunpack.c.h.b16 %v459
    %v610 = vunpack.c.l.b16 %v460
    %v611 = vunpack.c.h.b16 %v460
    %v612 = vunpack.c.l.b16 %v461
    %v613 = vunpack.c.h.b16 %v461
    %v614 = vunpack.c.l.b16 %v462
    %v615 = vunpack.c.h.b16 %v462
    %v616 = vunpack.c.l.b16 %v463
    %v617 = vunpack.c.h.b16 %v463
    %v618 = vunpack.c.l.b16 %v464
    %v619 = vunpack.c.h.b16 %v464
    %v620 = vunpack.c.l.b16 %v465
    %v621 = vunpack.c.h.b16 %v465
    %v622 = vunpack.c.l.b16 %v466
    %v623 = vunpack.c.h.b16 %v466
    %v624 = vunpack.c.l.b16 %v467
    %v625 = vunpack.c.h.b16 %v467
    %v626 = vunpack.c.l.b16 %v468
    %v627 = vunpack.c.h.b16 %v468
    %v628 = vunpack.c.l.b16 %v469
    %v629 = vunpack.c.h.b16 %v469
    %v630 = vunpack.c.l.b16 %v470
    %v631 = vunpack.c.h.b16 %v470
    %v632 = vunpack.c.l.b16 %v471
    %v633 = vunpack.c.h.b16 %v471
    %v634 = vunpack.c.l.b16 %v472
    %v635 = vunpack.c.h.b16 %v472
    %v636 = vunpack.c.l.b16 %v473
    %v637 = vunpack.c.h.b16 %v473
    %v638 = vunpack.c.l.b16 %v474
    %v639 = vunpack.c.h.b16 %v474
    %v640 = vunpack.c.l.b16 %v475
    %v641 = vunpack.c.h.b16 %v475
    %v642 = vunpack.c.l.b16 %v476
    %v643 = vunpack.c.h.b16 %v476
    %v644 = vunpack.c.l.b16 %v477
    %v645 = vunpack.c.h.b16 %v477
    %v646 = vunpack.c.l.b16 %v478
    %v647 = vunpack.c.h.b16 %v478
    %v648 = vunpack.c.l.b16 %v479
    %v649 = vunpack.c.h.b16 %v479
    %v650 = vunpack.c.l.b16 %v480
    %v651 = vunpack.c.h.b16 %v480
    %v652 = vunpack.c.l.b16 %v481
    %v653 = vunpack.c.h.b16 %v481
    %v654 = vunpack.c.l.b16 %v482
    %v655 = vunpack.c.h.b16 %v482
    %v656 = vunpack.c.l.b16 %v483
    %v657 = vunpack.c.h.b16 %v483
    %v658 = vunpack.c.l.b16 %v484
    %v659 = vunpack.c.h.b16 %v484
    %v660 = vunpack.c.l.b16 %v485
    %v661 = vunpack.c.h.b16 %v485
    %v662 = vunpack.c.l.b16 %v486
    %v663 = vunpack.c.h.b16 %v486
    %v664 = vunpack.c.l.b16 %v487
    %v665 = vunpack.c.h.b16 %v487
    %v666 = vunpack.c.l.b16 %v488
    %v667 = vunpack.c.h.b16 %v488
    %v668 = vunpack.c.l.b16 %v489
    %v669 = vunpack.c.h.b16 %v489
    %v670 = vunpack.c.l.b16 %v490
    %v671 = vunpack.c.h.b16 %v490
    %v672 = vunpack.c.l.b16 %v491
    %v673 = vunpack.c.h.b16 %v491
    %v674 = vunpack.c.l.b16 %v492
    %v675 = vunpack.c.h.b16 %v492
    %v676 = vunpack.c.l.b16 %v493
    %v677 = vunpack.c.h.b16 %v493
    %v678 = vunpack.c.l.b16 %v494
    %v679 = vunpack.c.h.b16 %v494
    %v680 = vunpack.c.l.b16 %v495
    %v681 = vunpack.c.h.b16 %v495
    %v682 = vunpack.c.l.b16 %v496
    %v683 = vunpack.c.h.b16 %v496
    %v684 = vunpack.c.l.b16 %v497
    %v685 = vunpack.c.h.b16 %v497
    %v686 = vunpack.c.l.b16 %v498
    %v687 = vunpack.c.h.b16 %v498
    %v688 = vunpack.c.l.b16 %v499
    %v689 = vunpack.c.h.b16 %v499
    %v690 = vunpack.c.l.b16 %v500
    %v691 = vunpack.c.h.b16 %v500
    %v692 = vunpack.c.l.b16 %v501
    %v693 = vunpack.c.h.b16 %v501
    %v694 = vpack.c.b16 %v568, %v566
    %v695 = vpack.c.b16 %v569, %v567
    %v696 = vpack.c.b16 %v572, %v570
    %v697 = vpack.c.b16 %v573, %v571
    %v698 = vpack.c.b16 %v576, %v574
    %v699 = vpack.c.b16 %v577, %v575
    %v700 = vpack.c.b16 %v580, %v578
    %v701 = vpack.c.b16 %v581, %v579
    %v702 = vpack.c.b16 %v584, %v582
    %v703 = vpack.c.b16 %v585, %v583
    %v704 = vpack.c.b16 %v588, %v586
    %v705 = vpack.c.b16 %v589, %v587
    %v706 = vpack.c.b16 %v592, %v590
    %v707 = vpack.c.b16 %v593, %v591
    %v708 = vpack.c.b16 %v596, %v594
    %v709 = vpack.c.b16 %v597, %v595
    %v710 = vpack.c.b16 %v600, %v598
    %v711 = vpack.c.b16 %v601, %v599
    %v712 = vpack.c.b16 %v604, %v602
    %v713 = vpack.c.b16 %v605, %v603
    %v714 = vpack.c.b16 %v608, %v606
    %v715 = vpack.c.b16 %v609, %v607
    %v716 = vpack.c.b16 %v612, %v610
    %v717 = vpack.c.b16 %v613, %v611
    %v718 = vpack.c.b16 %v616, %v614
    %v719 = vpack.c.b16 %v617, %v615
    %v720 = vpack.c.b16 %v620, %v618
    %v721 = vpack.c.b16 %v621, %v619
    %v722 = vpack.c.b16 %v624, %v622
    %v723 = vpack.c.b16 %v625, %v623
    %v724 = vpack.c.b16 %v628, %v626
    %v725 = vpack.c.b16 %v629, %v627
    %v726 = vpack.c.b16 %v632, %v630
    %v727 = vpack.c.b16 %v633, %v631
    %v728 = vpack.c.b16 %v636, %v634
    %v729 = vpack.c.b16 %v637, %v635
    %v730 = vpack.c.b16 %v640, %v638
    %v731 = vpack.c.b16 %v641, %v639
    %v732 = vpack.c.b16 %v644, %v642
    %v733 = vpack.c.b16 %v645, %v643
    %v734 = vpack.c.b16 %v648, %v646
    %v735 = vpack.c.b16 %v649, %v647
    %v736 = vpack.c.b16 %v652, %v650
    %v737 = vpack.c.b16 %v653, %v651
    %v738 = vpack.c.b16 %v656, %v654
    %v739 = vpack.c.b16 %v657, %v655
    %v740 = vpack.c.b16 %v660, %v658
    %v741 = vpack.c.b16 %v661, %v659
    %v742 = vpack.c.b16 %v664, %v662
    %v743 = vpack.c.b16 %v665, %v663
    %v744 = vpack.c.b16 %v668, %v666
    %v745 = vpack.c.b16 %v669, %v667
    %v746 = vpack.c.b16 %v672, %v670
    %v747 = vpack.c.b16 %v673, %v671
    %v748 = vpack.c.b16 %v676, %v674
    %v749 = vpack.c.b16 %v677, %v675
    %v750 = vpack.c.b16 %v680, %v678
    %v751 = vpack.c.b16 %v681, %v679
    %v752 = vpack.c.b16 %v684, %v682
    %v753 = vpack.c.b16 %v685, %v683
    %v754 = vpack.c.b16 %v688, %v686
    %v755 = vpack.c.b16 %v689, %v687
    %v756 = vpack.c.b16 %v692, %v690
    %v757 = vpack.c.b16 %v693, %v691
    %822 = vmatprep.subr.bf16.mxu0 %v709
    %823 = vmatpush1.bf16.msra.mxu0 %v708
    %824 = vmatprep.subr.bf16.mxu0 %v707
    %825 = vmatpush1.bf16.msra.mxu0 %v706
    %826 = vmatprep.subr.bf16.mxu0 %v705
    %827 = vmatpush1.bf16.msra.mxu0 %v704
    %828 = vmatprep.subr.bf16.mxu0 %v703
    %829 = vmatpush1.bf16.msra.mxu0 %v702
    %830 = vmatprep.subr.bf16.mxu0 %v701
    %831 = vmatpush1.bf16.msra.mxu0 %v700
    %832 = vmatprep.subr.bf16.mxu0 %v699
    %833 = vmatpush1.bf16.msra.mxu0 %v698
    %834 = vmatprep.subr.bf16.mxu0 %v697
    %835 = vmatpush1.bf16.msra.mxu0 %v696
    %836 = vmatprep.subr.bf16.mxu0 %v695
    %837 = vmatpush1.bf16.msra.mxu0 %v694
    %838 = vmatprep.subr.bf16.mxu0 %v725
    %839 = vmatpush2.bf16.msra.mxu0 %v724
    %840 = vmatprep.subr.bf16.mxu0 %v723
    %841 = vmatpush2.bf16.msra.mxu0 %v722
    %842 = vmatprep.subr.bf16.mxu0 %v721
    %843 = vmatpush2.bf16.msra.mxu0 %v720
    %844 = vmatprep.subr.bf16.mxu0 %v719
    %845 = vmatpush2.bf16.msra.mxu0 %v718
    %846 = vmatprep.subr.bf16.mxu0 %v717
    %847 = vmatpush2.bf16.msra.mxu0 %v716
    %848 = vmatprep.subr.bf16.mxu0 %v715
    %849 = vmatpush2.bf16.msra.mxu0 %v714
    %850 = vmatprep.subr.bf16.mxu0 %v713
    %851 = vmatpush2.bf16.msra.mxu0 %v712
    %852 = vmatprep.subr.bf16.mxu0 %v711
    %853 = vmatpush2.bf16.msra.mxu0 %v710
    %854 = vmatprep.mubr.bf16.mxu0 %v435
    %855 = vmatmul.mubr.bf16.gmra.mxu0 %v434
    %v856 = vpop.f32.mrf.mxu0
    %v857 = vadd.f32 0.0, %v856
    %v858 = vpop.f32.mrf.mxu0
    %v859 = vadd.f32 0.0, %v858
    %v860 = vpop.f32.mrf.mxu0
    %v861 = vpop.f32.mrf.mxu0
    %862 = vdwg.mxu0
    %863 = vmatprep.subr.bf16.mxu0 %v741
    %864 = vmatpush1.bf16.msra.mxu0 %v740
    %865 = vmatprep.subr.bf16.mxu0 %v739
    %866 = vmatpush1.bf16.msra.mxu0 %v738
    %867 = vmatprep.subr.bf16.mxu0 %v737
    %868 = vmatpush1.bf16.msra.mxu0 %v736
    %869 = vmatprep.subr.bf16.mxu0 %v735
    %870 = vmatpush1.bf16.msra.mxu0 %v734
    %871 = vmatprep.subr.bf16.mxu0 %v733
    %872 = vmatpush1.bf16.msra.mxu0 %v732
    %873 = vmatprep.subr.bf16.mxu0 %v731
    %874 = vmatpush1.bf16.msra.mxu0 %v730
    %875 = vmatprep.subr.bf16.mxu0 %v729
    %876 = vmatpush1.bf16.msra.mxu0 %v728
    %877 = vmatprep.subr.bf16.mxu0 %v727
    %878 = vmatpush1.bf16.msra.mxu0 %v726
    %879 = vmatprep.subr.bf16.mxu0 %v757
    %880 = vmatpush2.bf16.msra.mxu0 %v756
    %881 = vmatprep.subr.bf16.mxu0 %v755
    %882 = vmatpush2.bf16.msra.mxu0 %v754
    %883 = vmatprep.subr.bf16.mxu0 %v753
    %884 = vmatpush2.bf16.msra.mxu0 %v752
    %885 = vmatprep.subr.bf16.mxu0 %v751
    %886 = vmatpush2.bf16.msra.mxu0 %v750
    %887 = vmatprep.subr.bf16.mxu0 %v749
    %888 = vmatpush2.bf16.msra.mxu0 %v748
    %889 = vmatprep.subr.bf16.mxu0 %v747
    %890 = vmatpush2.bf16.msra.mxu0 %v746
    %891 = vmatprep.subr.bf16.mxu0 %v745
    %892 = vmatpush2.bf16.msra.mxu0 %v744
    %893 = vmatprep.subr.bf16.mxu0 %v743
    %894 = vmatpush2.bf16.msra.mxu0 %v742
    %895 = vmatprep.mubr.bf16.mxu0 %v437
    %896 = vmatmul.mubr.bf16.gmra.mxu0 %v436
    %v897 = vpop.f32.mrf.mxu0
    %v898 = vadd.f32 %v857, %v897
    %v899 = vpop.f32.mrf.mxu0
    %v900 = vadd.f32 %v859, %v899
    %v901 = vpop.f32.mrf.mxu0
    %v902 = vpop.f32.mrf.mxu0
    %903 = vdwg.mxu0
    %v904 = vld [vmem:[%s5] sm:$0x3]
    %v905 = vld [vmem:[%s6] sm:$0x3]
    %v906 = vrot.slane %v898, 4
    %v907 = vadd.f32 %v898, %v906
    %v908 = vrot.slane %v907, 2
    %v909 = vadd.f32 %v907, %v908
    %v910 = vrot.slane %v909, 1
    %v911 = vadd.f32 %v909, %v910
    %v912 = vrot.slane %v900, 4
    %v913 = vadd.f32 %v900, %v912
    %v914 = vrot.slane %v913, 2
    %v915 = vadd.f32 %v913, %v914
    %v916 = vrot.slane %v915, 1
    %v917 = vadd.f32 %v915, %v916
    %v918 = vmul.f32 %v911, 0.125
    %v919 = vmul.f32 %v917, 0.125
    %v920 = vmul.f32 %v898, %v898
    %v921 = vmul.f32 %v900, %v900
    %v922 = vrot.slane %v920, 4
    %v923 = vadd.f32 %v920, %v922
    %v924 = vrot.slane %v923, 2
    %v925 = vadd.f32 %v923, %v924
    %v926 = vrot.slane %v925, 1
    %v927 = vadd.f32 %v925, %v926
    %v928 = vrot.slane %v921, 4
    %v929 = vadd.f32 %v921, %v928
    %v930 = vrot.slane %v929, 2
    %v931 = vadd.f32 %v929, %v930
    %v932 = vrot.slane %v931, 1
    %v933 = vadd.f32 %v931, %v932
    %v934 = vmul.f32 %v927, 0.125
    %v935 = vmul.f32 %v933, 0.125
    %v936 = vmul.f32 %v918, %v918
    %v937 = vmul.f32 %v919, %v919
    %v938 = vsub.f32 %v934, %v936
    %v939 = vsub.f32 %v935, %v937
    %v940 = vmax.f32 %v938, 0.0
    %v941 = vmax.f32 %v939, 0.0
    %v942 = vadd.f32 %v940, 1e-05
    %v943 = vadd.f32 %v941, 1e-05
    %v944 = vrsqrt.pop %v942
    %v945 = vrsqrt.pop %v943
    %v948 = vcombine.low %v944, %v945
    %v950 = vunpack.c.l.s4 1966171168
    %v951 = vunpack.c.0.s8 %v950
    %v952 = vlaneseq
    %v953 = vshrl.u32 %v952, 7
    %v954 = vsub.s32 %v951, %v953
    %v955 = vrot.slane %v948, %v954
    %v957 = vunpack.c.l.s4 1966171168
    %v958 = vunpack.c.0.s8 %v957
    %v959 = vlaneseq
    %v960 = vshrl.u32 %v959, 7
    %v961 = vsub.s32 %v958, %v960
    %v962 = vrot.slane %v955, %v961
    %v964 = vmul.f32 %v904, %v962
    %v966 = vlaneseq
    %v967 = vshrl.u32 %v966, 7
    %v968 = vsub.s32 0, %v967
    %v969 = vrot.slane %v964, %v968
    %v970 = vlaneseq
    %v971 = vshrl.u32 %v970, 7
    %v972 = vsub.s32 1, %v971
    %v973 = vrot.slane %v964, %v972
    %v976 = vmul.f32 %v898, %v969
    %v977 = vmul.f32 %v900, %v973
    %v978 = vmul.f32 %v918, %v969
    %v979 = vmul.f32 %v919, %v973
    %v982 = vcombine.low %v978, %v979
    %v984 = vunpack.c.l.s4 1966171168
    %v985 = vunpack.c.0.s8 %v984
    %v986 = vlaneseq
    %v987 = vshrl.u32 %v986, 7
    %v988 = vsub.s32 %v985, %v987
    %v989 = vrot.slane %v982, %v988
    %v991 = vunpack.c.l.s4 1966171168
    %v992 = vunpack.c.0.s8 %v991
    %v993 = vlaneseq
    %v994 = vshrl.u32 %v993, 7
    %v995 = vsub.s32 %v992, %v994
    %v996 = vrot.slane %v989, %v995
    %v998 = vsub.f32 %v905, %v996
    %v1000 = vlaneseq
    %v1001 = vshrl.u32 %v1000, 7
    %v1002 = vsub.s32 0, %v1001
    %v1003 = vrot.slane %v998, %v1002
    %v1004 = vlaneseq
    %v1005 = vshrl.u32 %v1004, 7
    %v1006 = vsub.s32 1, %v1005
    %v1007 = vrot.slane %v998, %v1006
    %v1010 = vadd.f32 %v976, %v1003
    %v1011 = vadd.f32 %v977, %v1007
    %v1012 = vmax.f32 %v1010, 0.0
    %v1013 = vmax.f32 %v1011, 0.0
    %v1014 = vpack.c.bf16 %v1012, %v1012
    %v1015 = vpack.c.bf16 %v1013, %v1013
    %v1016 = vld [vmem:[#allocation10] sm:$0xf]
    %v1017 = vld [vmem:[#allocation10 + $0x4] sm:$0xf]
    %v1018 = vld [vmem:[#allocation10 + $0x8] sm:$0xf]
    %v1019 = vld [vmem:[#allocation10 + $0xc] sm:$0xf]
    %v1020 = vld [vmem:[#allocation10 + $0x10] sm:$0xf]
    %v1021 = vld [vmem:[#allocation10 + $0x14] sm:$0xf]
    %v1022 = vld [vmem:[#allocation10 + $0x18] sm:$0xf]
    %v1023 = vld [vmem:[#allocation10 + $0x1c] sm:$0xf]
    %v1024 = vld [vmem:[#allocation10 + $0x20] sm:$0xf]
    %v1025 = vld [vmem:[#allocation10 + $0x24] sm:$0xf]
    %v1026 = vld [vmem:[#allocation10 + $0x28] sm:$0xf]
    %v1027 = vld [vmem:[#allocation10 + $0x2c] sm:$0xf]
    %v1028 = vld [vmem:[#allocation10 + $0x30] sm:$0xf]
    %v1029 = vld [vmem:[#allocation10 + $0x34] sm:$0xf]
    %v1030 = vld [vmem:[#allocation10 + $0x38] sm:$0xf]
    %v1031 = vld [vmem:[#allocation10 + $0x3c] sm:$0xf]
    %v1032 = vld [vmem:[#allocation10 + $0x40] sm:$0xf]
    %v1033 = vld [vmem:[#allocation10 + $0x44] sm:$0xf]
    %v1034 = vld [vmem:[#allocation10 + $0x48] sm:$0xf]
    %v1035 = vld [vmem:[#allocation10 + $0x4c] sm:$0xf]
    %v1036 = vld [vmem:[#allocation10 + $0x50] sm:$0xf]
    %v1037 = vld [vmem:[#allocation10 + $0x54] sm:$0xf]
    %v1038 = vld [vmem:[#allocation10 + $0x58] sm:$0xf]
    %v1039 = vld [vmem:[#allocation10 + $0x5c] sm:$0xf]
    %v1040 = vld [vmem:[#allocation10 + $0x60] sm:$0xf]
    %v1041 = vld [vmem:[#allocation10 + $0x64] sm:$0xf]
    %v1042 = vld [vmem:[#allocation10 + $0x68] sm:$0xf]
    %v1043 = vld [vmem:[#allocation10 + $0x6c] sm:$0xf]
    %v1044 = vld [vmem:[#allocation10 + $0x70] sm:$0xf]
    %v1045 = vld [vmem:[#allocation10 + $0x74] sm:$0xf]
    %v1046 = vld [vmem:[#allocation10 + $0x78] sm:$0xf]
    %v1047 = vld [vmem:[#allocation10 + $0x7c] sm:$0xf]
    %v1048 = vld [vmem:[%s8] sm:$0x1]
    %v1050 = vlaneseq
    %v1051 = vshrl.u32 %v1050, 7
    %v1052 = vsub.s32 0, %v1051
    %v1053 = vrot.slane %v1048, %v1052
    %v1087 = vunpack.c.l.b16 %v1016
    %v1088 = vunpack.c.l.b16 %v1017
    %v1089 = vunpack.c.l.b16 %v1018
    %v1090 = vunpack.c.l.b16 %v1019
    %v1091 = vunpack.c.l.b16 %v1020
    %v1092 = vunpack.c.l.b16 %v1021
    %v1093 = vunpack.c.l.b16 %v1022
    %v1094 = vunpack.c.l.b16 %v1023
    %v1095 = vunpack.c.l.b16 %v1024
    %v1096 = vunpack.c.l.b16 %v1025
    %v1097 = vunpack.c.l.b16 %v1026
    %v1098 = vunpack.c.l.b16 %v1027
    %v1099 = vunpack.c.l.b16 %v1028
    %v1100 = vunpack.c.l.b16 %v1029
    %v1101 = vunpack.c.l.b16 %v1030
    %v1102 = vunpack.c.l.b16 %v1031
    %v1103 = vunpack.c.l.b16 %v1032
    %v1104 = vunpack.c.l.b16 %v1033
    %v1105 = vunpack.c.l.b16 %v1034
    %v1106 = vunpack.c.l.b16 %v1035
    %v1107 = vunpack.c.l.b16 %v1036
    %v1108 = vunpack.c.l.b16 %v1037
    %v1109 = vunpack.c.l.b16 %v1038
    %v1110 = vunpack.c.l.b16 %v1039
    %v1111 = vunpack.c.l.b16 %v1040
    %v1112 = vunpack.c.l.b16 %v1041
    %v1113 = vunpack.c.l.b16 %v1042
    %v1114 = vunpack.c.l.b16 %v1043
    %v1115 = vunpack.c.l.b16 %v1044
    %v1116 = vunpack.c.l.b16 %v1045
    %v1117 = vunpack.c.l.b16 %v1046
    %v1118 = vunpack.c.l.b16 %v1047
    %v1119 = vpack.c.b16 %v1088, %v1087
    %v1120 = vpack.c.b16 %v1090, %v1089
    %v1121 = vpack.c.b16 %v1092, %v1091
    %v1122 = vpack.c.b16 %v1094, %v1093
    %v1123 = vpack.c.b16 %v1096, %v1095
    %v1124 = vpack.c.b16 %v1098, %v1097
    %v1125 = vpack.c.b16 %v1100, %v1099
    %v1126 = vpack.c.b16 %v1102, %v1101
    %v1127 = vpack.c.b16 %v1104, %v1103
    %v1128 = vpack.c.b16 %v1106, %v1105
    %v1129 = vpack.c.b16 %v1108, %v1107
    %v1130 = vpack.c.b16 %v1110, %v1109
    %v1131 = vpack.c.b16 %v1112, %v1111
    %v1132 = vpack.c.b16 %v1114, %v1113
    %v1133 = vpack.c.b16 %v1116, %v1115
    %v1134 = vpack.c.b16 %v1118, %v1117
    %1151 = vmatprep.subr.bf16.mxu0 0
    %1152 = vmatpush1.bf16.msra.mxu0 %v1126
    %1153 = vmatprep.subr.bf16.mxu0 0
    %1154 = vmatpush1.bf16.msra.mxu0 %v1125
    %1155 = vmatprep.subr.bf16.mxu0 0
    %1156 = vmatpush1.bf16.msra.mxu0 %v1124
    %1157 = vmatprep.subr.bf16.mxu0 0
    %1158 = vmatpush1.bf16.msra.mxu0 %v1123
    %1159 = vmatprep.subr.bf16.mxu0 0
    %1160 = vmatpush1.bf16.msra.mxu0 %v1122
    %1161 = vmatprep.subr.bf16.mxu0 0
    %1162 = vmatpush1.bf16.msra.mxu0 %v1121
    %1163 = vmatprep.subr.bf16.mxu0 0
    %1164 = vmatpush1.bf16.msra.mxu0 %v1120
    %1165 = vmatprep.subr.bf16.mxu0 0
    %1166 = vmatpush1.bf16.msra.mxu0 %v1119
    %1167 = vmatprep.subr.bf16.mxu0 0
    %1168 = vmatpush2.bf16.msra.mxu0 %v1134
    %1169 = vmatprep.subr.bf16.mxu0 0
    %1170 = vmatpush2.bf16.msra.mxu0 %v1133
    %1171 = vmatprep.subr.bf16.mxu0 0
    %1172 = vmatpush2.bf16.msra.mxu0 %v1132
    %1173 = vmatprep.subr.bf16.mxu0 0
    %1174 = vmatpush2.bf16.msra.mxu0 %v1131
    %1175 = vmatprep.subr.bf16.mxu0 0
    %1176 = vmatpush2.bf16.msra.mxu0 %v1130
    %1177 = vmatprep.subr.bf16.mxu0 0
    %1178 = vmatpush2.bf16.msra.mxu0 %v1129
    %1179 = vmatprep.subr.bf16.mxu0 0
    %1180 = vmatpush2.bf16.msra.mxu0 %v1128
    %1181 = vmatprep.subr.bf16.mxu0 0
    %1182 = vmatpush2.bf16.msra.mxu0 %v1127
    %1183 = vmatprep.mubr.bf16.mxu0 %v1015
    %1184 = vmatmul.mubr.bf16.gmra.mxu0 %v1014
    %v1185 = vpop.f32.mrf.mxu0
    %v1186 = vadd.f32 %v1053, %v1185
    %v1187 = vpop.f32.mrf.mxu0
    %v1188 = vpop.f32.mrf.mxu0
    %v1189 = vpop.f32.mrf.mxu0
    %1190 = vdwg.mxu0
    %1191 = vst [vmem:[#allocation11] sm:$0xff] %v1186
    // Predicated region
    $region58: #{tpu_custom_call.1} parent=1 // pred_check
      _
    $region59: #{tpu_custom_call.1} parent=1 // pred_check_branch
      %1193 = sbr.rel (0) target = $region61
    $region60: #{tpu_custom_call.1} parent=1 // pred_region
      %s1195 = ssub.s32 128, 128
      %1196 = vsyncadd [#allocation4], %s1195
      %s1198 = sshll.u32 [#allocation11], 4
      %s1199 = int_to_ptr.vmem [resolvable:$true] %s1198
      %1201 = dma.vmem_to_hbm [thread:$0]  %s1199, 128, %s9, [#allocation4]
    $region61: #{tpu_custom_call.1} parent=1 // pred_fallthru
      _
    // Predicated region
    $region62: #{tpu_custom_call.1} parent=1 // pred_check
      _
    $region63: #{tpu_custom_call.1} parent=1 // pred_check_branch
      %1203 = sbr.rel (0) target = $region65
    $region64: #{tpu_custom_call.1} parent=1 // pred_region
      %1204 = dma.done [#allocation4], 128
    $region65: #{tpu_custom_call.1} parent=1 // pred_fallthru
      _
    %1205 = vsyncpa [#allocation3], 1
    %1206 = vsyncpa [#allocation6], 1
    %1207 = vsyncpa [#allocation9], 1
    %1208 = vsyncpa [#allocation4], 1

</llo_original>
